<compile_context>
chip_gen: v7x
topology: tpu7x:2x2x1
jax: 0.10.0
libtpu: 0.0.40
codegen_flags: <defaults>
</compile_context>

<pallas_src>
import math

import jax
import jax.numpy as jnp
import numpy as np
from jax.experimental import pallas as pl
from jax.experimental.pallas import tpu as pltpu


MATMUL_DTYPE = jnp.bfloat16
LN_EPS = 1e-5
NEG_BIG = -1e30  # finite "masked" logit (avoids NaN when a whole row is masked)


def _round_up(x, m):
    return ((x + m - 1) // m) * m


# ---------------------------------------------------------------------------
# sinusoid position table (same formula as the PyTorch helper)
# ---------------------------------------------------------------------------
def get_sinusoid_encoding_table(n_position, d_hid):
    pos = np.arange(n_position, dtype=np.float64)[:, None]
    idx = np.arange(d_hid, dtype=np.float64)[None, :]
    table = pos / np.power(10000.0, 2.0 * (np.floor(idx / 2.0)) / d_hid)
    table[:, 0::2] = np.sin(table[:, 0::2])
    table[:, 1::2] = np.cos(table[:, 1::2])
    return jnp.asarray(table, dtype=jnp.float32)


# ---------------------------------------------------------------------------
# Kernel 1: row-tiled linear  y = (x_bf16 @ W_bf16) + b   (used for fused QKV)
# ---------------------------------------------------------------------------
def _linear_kernel(x_ref, w_ref, b_ref, o_ref):
    acc = jnp.dot(x_ref[...].astype(MATMUL_DTYPE), w_ref[...],
                  preferred_element_type=jnp.float32)
    o_ref[...] = (acc + b_ref[...]).astype(o_ref.dtype)


def linear(x, w, b, *, out_dtype=MATMUL_DTYPE, tile_m=256):
    M, K = x.shape
    K2, N = w.shape
    assert K == K2
    tm = min(tile_m, _round_up(M, 8))
    return pl.pallas_call(
        _linear_kernel,
        grid=(pl.cdiv(M, tm),),
        out_shape=jax.ShapeDtypeStruct((M, N), out_dtype),
        in_specs=[
            pl.BlockSpec((tm, K), lambda i: (i, 0)),
            pl.BlockSpec((K, N), lambda i: (0, 0)),
            pl.BlockSpec((1, N), lambda i: (0, 0)),
        ],
        out_specs=pl.BlockSpec((tm, N), lambda i: (i, 0)),
        compiler_params=pltpu.CompilerParams(dimension_semantics=("parallel",)),
    )(x, w.astype(MATMUL_DTYPE), b.reshape(1, N).astype(jnp.float32))


# ---------------------------------------------------------------------------
# Kernel 2: multi-head self-attention, one batch element per grid step,
#           all heads handled inside (no HBM head permutes, no attn writeback)
# ---------------------------------------------------------------------------
def _make_attn_kernel(n_head, d_k, d_v, inv_temp):
    dq = n_head * d_k

    def kernel(qkv_ref, bias_ref, o_ref):
        qkv = qkv_ref[0]           # (L, 2*H*d_k + H*d_v)  bf16
        bias = bias_ref[0]         # (1, L)  f32 additive key-padding bias
        outs = []
        for h in range(n_head):
            qh = qkv[:, h * d_k:(h + 1) * d_k]                  # (L, d_k)
            kh = qkv[:, dq + h * d_k: dq + (h + 1) * d_k]       # (L, d_k)
            vh = qkv[:, 2 * dq + h * d_v: 2 * dq + (h + 1) * d_v]
            s = jax.lax.dot_general(qh, kh, (((1,), (1,)), ((), ())),
                                    preferred_element_type=jnp.float32)
            s = s * inv_temp + bias                              # (L, L) f32
            m = jnp.max(s, axis=-1, keepdims=True)
            e = jnp.exp(s - m)
            p = e / jnp.sum(e, axis=-1, keepdims=True)
            outs.append(jnp.dot(p.astype(qkv.dtype), vh,
                                preferred_element_type=jnp.float32))
        o_ref[0] = jnp.concatenate(outs, axis=-1).astype(o_ref.dtype)

    return kernel


def attention(qkv, attn_bias, n_head, d_k, d_v, temperature):
    B, L, C = qkv.shape
    Dv = n_head * d_v
    return pl.pallas_call(
        _make_attn_kernel(n_head, d_k, d_v, 1.0 / float(temperature)),
        grid=(B,),
        out_shape=jax.ShapeDtypeStruct((B, L, Dv), MATMUL_DTYPE),
        in_specs=[
            pl.BlockSpec((1, L, C), lambda b: (b, 0, 0)),
            pl.BlockSpec((1, 1, L), lambda b: (b, 0, 0)),
        ],
        out_specs=pl.BlockSpec((1, L, Dv), lambda b: (b, 0, 0)),
        compiler_params=pltpu.CompilerParams(dimension_semantics=("parallel",)),
    )(qkv, attn_bias)


# ---------------------------------------------------------------------------
# Kernel 3: fc + residual + LayerNorm + pad-mask-zero (row tiled)
# ---------------------------------------------------------------------------
def _fc_ln_kernel(x_ref, w_ref, b_ref, res_ref, g_ref, beta_ref, keep_ref, o_ref):
    y = jnp.dot(x_ref[...], w_ref[...], preferred_element_type=jnp.float32)
    y = y + b_ref[...] + res_ref[...]
    mean = jnp.mean(y, axis=-1, keepdims=True)
    var = jnp.mean(jnp.square(y - mean), axis=-1, keepdims=True)
    yn = (y - mean) * jax.lax.rsqrt(var + LN_EPS)
    o_ref[...] = (yn * g_ref[...] + beta_ref[...]) * keep_ref[...]


def fc_residual_layernorm_mask(ctx, w, b, residual, gamma, beta, keep, *, tile_m=256):
    M, K = ctx.shape
    K2, N = w.shape
    assert K == K2
    tm = min(tile_m, _round_up(M, 8))
    return pl.pallas_call(
        _fc_ln_kernel,
        grid=(pl.cdiv(M, tm),),
        out_shape=jax.ShapeDtypeStruct((M, N), jnp.float32),
        in_specs=[
            pl.BlockSpec((tm, K), lambda i: (i, 0)),
            pl.BlockSpec((K, N), lambda i: (0, 0)),
            pl.BlockSpec((1, N), lambda i: (0, 0)),
            pl.BlockSpec((tm, N), lambda i: (i, 0)),
            pl.BlockSpec((1, N), lambda i: (0, 0)),
            pl.BlockSpec((1, N), lambda i: (0, 0)),
            pl.BlockSpec((tm, 1), lambda i: (i, 0)),
        ],
        out_specs=pl.BlockSpec((tm, N), lambda i: (i, 0)),
        compiler_params=pltpu.CompilerParams(dimension_semantics=("parallel",)),
    )(ctx, w.astype(MATMUL_DTYPE), b.reshape(1, N).astype(jnp.float32),
      residual, gamma.reshape(1, N), beta.reshape(1, N), keep)


# ---------------------------------------------------------------------------
# Kernel 4: Conv1d (as sum of shifted matmuls) + bias + ReLU   (per batch)
# ---------------------------------------------------------------------------
def _make_conv_relu_kernel(ksize, seq_len):
    def kernel(x_ref, w_ref, b_ref, o_ref):
        acc = jnp.zeros((seq_len, o_ref.shape[-1]), jnp.float32)
        for j in range(ksize):
            xj = x_ref[0, pl.ds(j, seq_len), :]
            acc = acc + jnp.dot(xj, w_ref[j], preferred_element_type=jnp.float32)
        acc = acc + b_ref[...]
        o_ref[0] = jnp.maximum(acc, 0.0).astype(o_ref.dtype)

    return kernel


def conv1d_relu(x_pad, w, b, seq_len):
    B, Lp, Din = x_pad.shape
    k, Din2, Dout = w.shape
    assert Din == Din2
    return pl.pallas_call(
        _make_conv_relu_kernel(k, seq_len),
        grid=(B,),
        out_shape=jax.ShapeDtypeStruct((B, seq_len, Dout), MATMUL_DTYPE),
        in_specs=[
            pl.BlockSpec((1, Lp, Din), lambda bi: (bi, 0, 0)),
            pl.BlockSpec((k, Din, Dout), lambda bi: (0, 0, 0)),
            pl.BlockSpec((1, Dout), lambda bi: (0, 0)),
        ],
        out_specs=pl.BlockSpec((1, seq_len, Dout), lambda bi: (bi, 0, 0)),
        compiler_params=pltpu.CompilerParams(dimension_semantics=("parallel",)),
    )(x_pad, w.astype(MATMUL_DTYPE), b.reshape(1, Dout).astype(jnp.float32))


# ---------------------------------------------------------------------------
# Kernel 5: Conv1d + bias + LayerNorm (no residual, per module spec)
#           + pad-mask-zero   (per batch)
# ---------------------------------------------------------------------------
def _make_conv_ln_kernel(ksize, seq_len):
    def kernel(h_ref, w_ref, b_ref, g_ref, beta_ref, keep_ref, o_ref):
        acc = jnp.zeros((seq_len, o_ref.shape[-1]), jnp.float32)
        for j in range(ksize):
            hj = h_ref[0, pl.ds(j, seq_len), :]
            acc = acc + jnp.dot(hj, w_ref[j], preferred_element_type=jnp.float32)
        y = acc + b_ref[...]
        mean = jnp.mean(y, axis=-1, keepdims=True)
        var = jnp.mean(jnp.square(y - mean), axis=-1, keepdims=True)
        yn = (y - mean) * jax.lax.rsqrt(var + LN_EPS)
        o_ref[0] = (yn * g_ref[...] + beta_ref[...]) * keep_ref[0]

    return kernel


def conv1d_ln_mask(h_pad, w, b, gamma, beta, keep_seq, seq_len):
    B, Lp, Din = h_pad.shape
    k, Din2, Dout = w.shape
    assert Din == Din2
    return pl.pallas_call(
        _make_conv_ln_kernel(k, seq_len),
        grid=(B,),
        out_shape=jax.ShapeDtypeStruct((B, seq_len, Dout), jnp.float32),
        in_specs=[
            pl.BlockSpec((1, Lp, Din), lambda bi: (bi, 0, 0)),
            pl.BlockSpec((k, Din, Dout), lambda bi: (0, 0, 0)),
            pl.BlockSpec((1, Dout), lambda bi: (0, 0)),
            pl.BlockSpec((1, Dout), lambda bi: (0, 0)),
            pl.BlockSpec((1, Dout), lambda bi: (0, 0)),
            pl.BlockSpec((1, seq_len, 1), lambda bi: (bi, 0, 0)),
        ],
        out_specs=pl.BlockSpec((1, seq_len, Dout), lambda bi: (bi, 0, 0)),
        compiler_params=pltpu.CompilerParams(dimension_semantics=("parallel",)),
    )(h_pad, w.astype(MATMUL_DTYPE), b.reshape(1, Dout).astype(jnp.float32),
      gamma.reshape(1, Dout), beta.reshape(1, Dout), keep_seq)


# ---------------------------------------------------------------------------
# One FFT block (MultiHeadAttention + PositionwiseFeedForward) -- Pallas path
# ---------------------------------------------------------------------------
def fft_block_forward(x, attn_bias, keep_rows, keep_seq, p, n_head, d_k, d_v, k1, k2):
    B, L, D = x.shape
    temperature = float(d_k) ** 0.5

    # fused Q/K/V projection (one wide matmul, row-tiled)
    qkv = linear(x.reshape(B * L, D), p["w_qkv"], p["b_qkv"]).reshape(B, L, -1)

    # attention (all heads in one grid step per batch element)
    ctx = attention(qkv, attn_bias, n_head, d_k, d_v, temperature)

    # fc + dropout(identity) + residual + LayerNorm + masked_fill(mask, 0)
    attn_out = fc_residual_layernorm_mask(
        ctx.reshape(B * L, n_head * d_v), p["w_fc"], p["b_fc"],
        x.reshape(B * L, D), p["ln1_g"], p["ln1_b"], keep_rows,
    ).reshape(B, L, D)

    # position-wise FFN: conv1 -> relu -> conv2 -> LayerNorm -> masked_fill
    pad1 = (k1 - 1) // 2
    x1 = jnp.pad(attn_out.astype(MATMUL_DTYPE), ((0, 0), (pad1, pad1), (0, 0)))
    h = conv1d_relu(x1, p["w1"], p["b1"], L)
    pad2 = (k2 - 1) // 2
    h1 = jnp.pad(h, ((0, 0), (pad2, pad2), (0, 0)))
    out = conv1d_ln_mask(h1, p["w2"], p["b2"], p["ln2_g"], p["ln2_b"], keep_seq, L)
    return out


def _positional_input(enc_seq, params, config):
    B, L, D = enc_seq.shape
    if L > config["max_seq_len"]:
        pos = get_sinusoid_encoding_table(L, config["decoder_hidden"])[None, :L, :]
    else:
        pos = params["position_enc"][None, :L, :]
    return enc_seq + pos


def decoder_forward(enc_seq, mask, params, config):
    B, L, D = enc_seq.shape
    n_head = config["decoder_head"]
    d_k = d_v = config["decoder_hidden"] // n_head
    k1, k2 = config["fft_conv1d_kernel_size"]
    assert k1 % 2 == 1 and k2 % 2 == 1, "odd conv kernel sizes expected"

    x = _positional_input(enc_seq, params, config)

    maskf = mask.astype(jnp.float32)                       # (B, L), 1 = padded
    attn_bias = (maskf * NEG_BIG).reshape(B, 1, L)         # key-padding bias
    keep_seq = (1.0 - maskf).reshape(B, L, 1)
    keep_rows = keep_seq.reshape(B * L, 1)

    for p in params["layers"]:
        x = fft_block_forward(x, attn_bias, keep_rows, keep_seq, p,
                              n_head, d_k, d_v, k1, k2)
    return x


# ---------------------------------------------------------------------------
# parameter construction (matmul weights stored in bf16, everything else f32)
# ---------------------------------------------------------------------------
def init_decoder_params(key, config):
    d_model = config["decoder_hidden"]
    n_head = config["decoder_head"]
    d_k = d_v = d_model // n_head
    d_inner = config["fft_conv1d_filter_size"]
    k1, k2 = config["fft_conv1d_kernel_size"]
    n_layers = config["decoder_layer"]

    def u(k, shape, fan_in):
        bound = 1.0 / math.sqrt(fan_in)
        return jax.random.uniform(k, shape, jnp.float32, -bound, bound)

    layers = []
    for _ in range(n_layers):
        key, *ks = jax.random.split(key, 10)
        qkv_cols = 2 * n_head * d_k + n_head * d_v
        layers.append({
            "w_qkv": u(ks[0], (d_model, qkv_cols), d_model).astype(MATMUL_DTYPE),
            "b_qkv": u(ks[1], (qkv_cols,), d_model),
            "w_fc": u(ks[2], (n_head * d_v, d_model), n_head * d_v).astype(MATMUL_DTYPE),
            "b_fc": u(ks[3], (d_model,), n_head * d_v),
            "ln1_g": jnp.ones((d_model,), jnp.float32),
            "ln1_b": jnp.zeros((d_model,), jnp.float32),
            "w1": u(ks[4], (k1, d_model, d_inner), d_model * k1).astype(MATMUL_DTYPE),
            "b1": u(ks[5], (d_inner,), d_model * k1),
            "w2": u(ks[6], (k2, d_inner, d_model), d_inner * k2).astype(MATMUL_DTYPE),
            "b2": u(ks[7], (d_model,), d_inner * k2),
            "ln2_g": jnp.ones((d_model,), jnp.float32),
            "ln2_b": jnp.zeros((d_model,), jnp.float32),
        })
    pos_table = get_sinusoid_encoding_table(config["max_seq_len"] + 1,
                                            config["encoder_hidden"])
    return {"layers": layers, "position_enc": pos_table}


# ---------------------------------------------------------------------------
# Pure-JAX reference mirroring the kernel numerics (same bf16 casts)
# ---------------------------------------------------------------------------
def _ref_layernorm(y, g, b):
    mean = jnp.mean(y, axis=-1, keepdims=True)
    var = jnp.mean(jnp.square(y - mean), axis=-1, keepdims=True)
    return (y - mean) * jax.lax.rsqrt(var + LN_EPS) * g + b


def reference_decoder(enc_seq, mask, params, config):
    bf = MATMUL_DTYPE
    B, L, D = enc_seq.shape
    n_head = config["decoder_head"]
    d_k = d_v = config["decoder_hidden"] // n_head
    k1, k2 = config["fft_conv1d_kernel_size"]
    inv_temp = 1.0 / (float(d_k) ** 0.5)

    x = _positional_input(enc_seq, params, config)
    maskf = mask.astype(jnp.float32)
    bias = (maskf * NEG_BIG)[:, None, None, :]          # (B,1,1,L)
    keep = (1.0 - maskf)[:, :, None]                    # (B,L,1)

    for p in params["layers"]:
        qkv = (jnp.dot(x.reshape(B * L, D).astype(bf), p["w_qkv"],
                       preferred_element_type=jnp.float32) + p["b_qkv"]).astype(bf)
        qkv = qkv.reshape(B, L, -1)
        dq = n_head * d_k
        q = qkv[..., :dq].reshape(B, L, n_head, d_k)
        k_ = qkv[..., dq:2 * dq].reshape(B, L, n_head, d_k)
        v = qkv[..., 2 * dq:].reshape(B, L, n_head, d_v)
        s = jnp.einsum("blhd,bmhd->bhlm", q, k_,
                       preferred_element_type=jnp.float32) * inv_temp + bias
        s = s - jnp.max(s, axis=-1, keepdims=True)
        e = jnp.exp(s)
        pattn = e / jnp.sum(e, axis=-1, keepdims=True)
        ctx = jnp.einsum("bhlm,bmhd->blhd", pattn.astype(bf), v,
                         preferred_element_type=jnp.float32)
        ctx = ctx.reshape(B, L, n_head * d_v).astype(bf)

        y = jnp.dot(ctx.reshape(B * L, -1), p["w_fc"],
                    preferred_element_type=jnp.float32) + p["b_fc"]
        y = y.reshape(B, L, D) + x
        attn_out = _ref_layernorm(y, p["ln1_g"], p["ln1_b"]) * keep

        pad1 = (k1 - 1) // 2
        xin = jnp.pad(attn_out.astype(bf), ((0, 0), (pad1, pad1), (0, 0)))
        h = jnp.zeros((B, L, p["w1"].shape[-1]), jnp.float32)
        for j in range(k1):
            h = h + jnp.einsum("bli,io->blo", xin[:, j:j + L, :], p["w1"][j],
                               preferred_element_type=jnp.float32)
        h = jnp.maximum(h + p["b1"], 0.0).astype(bf)

        pad2 = (k2 - 1) // 2
        hp = jnp.pad(h, ((0, 0), (pad2, pad2), (0, 0)))
        o = jnp.zeros((B, L, D), jnp.float32)
        for j in range(k2):
            o = o + jnp.einsum("bli,io->blo", hp[:, j:j + L, :], p["w2"][j],
                               preferred_element_type=jnp.float32)
        o = o + p["b2"]
        # PositionwiseFeedForward with d_out=None => dont_add_residual=True
        x = _ref_layernorm(o, p["ln2_g"], p["ln2_b"]) * keep
    return x


if __name__ == "__main__":
    config = {
        "max_seq_len": 32,
        "encoder_hidden": 32,
        "decoder_hidden": 32,
        "decoder_layer": 2,
        "decoder_head": 2,
        "fft_conv1d_filter_size": 64,
        "fft_conv1d_kernel_size": (3, 3),
        "decoder_dropout": 0.1,   # dropout is identity (inference)
    }
    B, L = 2, 8
    D = config["decoder_hidden"]

    key = jax.random.PRNGKey(0)
    kp, kx = jax.random.split(key)
    params = init_decoder_params(kp, config)

    enc_seq = jax.random.normal(kx, (B, L, D), jnp.float32)
    # padding mask: batch 1 has its last 2 positions padded
    mask = jnp.zeros((B, L), dtype=bool)
    mask = mask.at[1, L - 2:].set(True)

    out = decoder_forward(enc_seq, mask, params, config)
    out = jax.block_until_ready(out)

    ref = reference_decoder(enc_seq, mask, params, config)
    np.testing.assert_allclose(np.asarray(out), np.asarray(ref),
                               atol=5e-3, rtol=5e-3)

    print("KERNEL_OK")
</pallas_src>

<mosaic_0001>
module attributes {stable_mosaic.version = 11 : i64} {
  func.func @_linear_kernel(%arg0: i32, %arg1: memref<16x32xf32, #tpu.memory_space<vmem>>, %arg2: memref<32x96xbf16, #tpu.memory_space<vmem>>, %arg3: memref<1x96xf32, #tpu.memory_space<vmem>>, %arg4: memref<16x96xbf16, #tpu.memory_space<vmem>>) attributes {dimension_semantics = [#tpu.dimension_semantics<parallel>], iteration_bounds = array<i64: 1>, scalar_prefetch = 0 : i64, scratch_operands = 0 : i64, tpu.core_type = #tpu.core_type<tc>, window_params = [{transform_indices = @transform_0, window_bounds = array<i64: 16, 32>}, {pipeline_mode = #tpu.pipeline_mode<synchronous>, transform_indices = @transform_1, window_bounds = array<i64: 32, 96>}, {pipeline_mode = #tpu.pipeline_mode<synchronous>, transform_indices = @transform_2, window_bounds = array<i64: 1, 96>}, {transform_indices = @transform_3, window_bounds = array<i64: 16, 96>}]} {
    %c0 = arith.constant 0 : index
    %c0_0 = arith.constant 0 : index
    %0 = vector.load %arg1[%c0, %c0_0] : memref<16x32xf32, #tpu.memory_space<vmem>>, vector<16x32xf32>
    %1 = arith.truncf %0 : vector<16x32xf32> to vector<16x32xbf16>
    %c0_1 = arith.constant 0 : index
    %c0_2 = arith.constant 0 : index
    %2 = vector.load %arg2[%c0_1, %c0_2] : memref<32x96xbf16, #tpu.memory_space<vmem>>, vector<32x96xbf16>
    %cst = arith.constant dense<0.000000e+00> : vector<16x96xf32>
    %3 = tpu.matmul %1, %2, %cst {dimension_numbers = #tpu.dot_dimension_numbers<[1], [0], [0], [1], [0, 0, 1, 1], [], []>} : vector<16x32xbf16>, vector<32x96xbf16>, vector<16x96xf32> -> vector<16x96xf32>
    %c0_3 = arith.constant 0 : index
    %c0_4 = arith.constant 0 : index
    %4 = vector.load %arg3[%c0_3, %c0_4] : memref<1x96xf32, #tpu.memory_space<vmem>>, vector<1x96xf32>
    %5 = vector.broadcast %4 : vector<1x96xf32> to vector<16x96xf32>
    %6 = arith.addf %3, %5 : vector<16x96xf32>
    %7 = arith.truncf %6 : vector<16x96xf32> to vector<16x96xbf16>
    %c0_5 = arith.constant 0 : index
    %c0_6 = arith.constant 0 : index
    %8 = vector.load %arg4[%c0_5, %c0_6] : memref<16x96xbf16, #tpu.memory_space<vmem>>, vector<16x96xbf16>
    tpu.vector_store %arg4[%c0_5, %c0_6], %7 {strides = array<i32>} : memref<16x96xbf16, #tpu.memory_space<vmem>>, vector<16x96xbf16>,
    return
  }
  func.func @transform_0(%arg0: i32) -> (i32, i32) {
    %c0_i32 = arith.constant 0 : i32
    %c0_i32_0 = arith.constant 0 : i32
    return %arg0, %c0_i32 : i32, i32
  }
  func.func @transform_1(%arg0: i32) -> (i32, i32) {
    %c0_i32 = arith.constant 0 : i32
    %c0_i32_0 = arith.constant 0 : i32
    %c0_i32_1 = arith.constant 0 : i32
    return %c0_i32, %c0_i32_0 : i32, i32
  }
  func.func @transform_2(%arg0: i32) -> (i32, i32) {
    %c0_i32 = arith.constant 0 : i32
    %c0_i32_0 = arith.constant 0 : i32
    %c0_i32_1 = arith.constant 0 : i32
    return %c0_i32, %c0_i32_0 : i32, i32
  }
  func.func @transform_3(%arg0: i32) -> (i32, i32) {
    %c0_i32 = arith.constant 0 : i32
    %c0_i32_0 = arith.constant 0 : i32
    return %arg0, %c0_i32 : i32, i32
  }
}

</mosaic_0001>

<llo_original>
// kernel: tpu_custom_call.1
$region0: #{tpu_custom_call.1}
  #allocation0 [shape = 'u32[]', space=smem, size = 0x4, offset = 0x4, fixed_abs, tag = 'smem constant byte address 0x4 - core index']
  #allocation1 [shape = 'u32[144,128]{1,0:T(1,128)}', space=vmem, size = 0x12000, scoped, tag = 'internal scratch']
  %s0 = inlined_call_operand.hbm [shape: f32[16,32], index: 0, kind: input, shape index: {}]
  %s1 = inlined_call_operand.hbm [shape: bf16[32,96], index: 1, kind: input, shape index: {}]
  %s2 = inlined_call_operand.vmem [shape: f32[1,96], index: 2, kind: input, shape index: {}]
  %s3 = inlined_call_operand.hbm [shape: bf16[16,96], index: 3, kind: output, shape index: {}]
  %s4 = sld [smem:[#allocation0]]
  $region30: #{tpu_custom_call.1} parent=0
    _
  %s6 = ssub.s32 1, %s4
  %s7 = scalar_select 0, %s6, %s4
  $region1: #{tpu_custom_call.1} parent=0
    #allocation2 [shape = 'u8[8192]{0}', space=vmem, size = 0x2000, scoped, tag = 'input window, operand 0, single buffered']
    #allocation3 [shape = 's32[1]{0}', space=sflag, size = 0x4, scoped, tag = 'scoped memory for tpu_custom_call.1']
    #allocation4 [shape = 's32[1]{0}', space=sflag, size = 0x4, scoped, tag = 'scoped memory for tpu_custom_call.1']
    #allocation5 [shape = 'u8[8192]{0}', space=vmem, size = 0x2000, scoped, tag = 'input window, operand 1, single buffered']
    #allocation6 [shape = 's32[1]{0}', space=sflag, size = 0x4, scoped, tag = 'scoped memory for tpu_custom_call.1']
    #allocation7 [shape = 'u8[4096]{0}', space=vmem, size = 0x1000, scoped, tag = 'output window, operand 0, single buffered']
    %8 = vsyncpa [#allocation3], 0
    %9 = vsyncpa [#allocation6], 0
    %10 = vsyncpa [#allocation4], 0
    // Predicated region
    $region2: #{tpu_custom_call.1} parent=1 // pred_check
      _
    $region3: #{tpu_custom_call.1} parent=1 // pred_check_branch
      %12 = sbr.rel (0) target = $region5
    $region4: #{tpu_custom_call.1} parent=1 // pred_region
      %s14 = ssub.s32 256, 256
      %15 = vsyncadd [#allocation3], %s14
      %s16 = sshll.u32 [#allocation2], 4
      %s17 = int_to_ptr.vmem [resolvable:$true] %s16
      %22 = dma.hbm_to_vmem [thread:$0]  %s0, 256, %s17, [#allocation3], 128, 128, 8
    $region5: #{tpu_custom_call.1} parent=1 // pred_fallthru
      _
    // Predicated region
    $region6: #{tpu_custom_call.1} parent=1 // pred_check
      _
    $region7: #{tpu_custom_call.1} parent=1 // pred_check_branch
      %24 = sbr.rel (0) target = $region9
    $region8: #{tpu_custom_call.1} parent=1 // pred_region
      %s26 = ssub.s32 256, 256
      %27 = vsyncadd [#allocation6], %s26
      %s28 = sshll.u32 [#allocation5], 4
      %s29 = int_to_ptr.vmem [resolvable:$true] %s28
      %34 = dma.hbm_to_vmem [thread:$0]  %s1, 256, %s29, [#allocation6], 64, 64, 4
    $region9: #{tpu_custom_call.1} parent=1 // pred_fallthru
      _
    // Predicated region
    $region10: #{tpu_custom_call.1} parent=1 // pred_check
      _
    $region11: #{tpu_custom_call.1} parent=1 // pred_check_branch
      %36 = sbr.rel (0) target = $region13
    $region12: #{tpu_custom_call.1} parent=1 // pred_region
      _
    $region13: #{tpu_custom_call.1} parent=1 // pred_fallthru
      _
    // Predicated region
    $region14: #{tpu_custom_call.1} parent=1 // pred_check
      _
    $region15: #{tpu_custom_call.1} parent=1 // pred_check_branch
      %38 = sbr.rel (0) target = $region17
    $region16: #{tpu_custom_call.1} parent=1 // pred_region
      %39 = dma.done [#allocation3], 256
    $region17: #{tpu_custom_call.1} parent=1 // pred_fallthru
      _
    // Predicated region
    $region18: #{tpu_custom_call.1} parent=1 // pred_check
      _
    $region19: #{tpu_custom_call.1} parent=1 // pred_check_branch
      %41 = sbr.rel (0) target = $region21
    $region20: #{tpu_custom_call.1} parent=1 // pred_region
      %42 = dma.done [#allocation6], 256
    $region21: #{tpu_custom_call.1} parent=1 // pred_fallthru
      _
    %v44 = vld [vmem:[#allocation2] sm:$0xff]
    %v45 = vld [vmem:[#allocation2 + $0x8] sm:$0xff]
    %v46 = vpack.c.bf16 %v45, %v44
    %v47 = vld [vmem:[#allocation5] sm:$0xf]
    %v48 = vld [vmem:[#allocation5 + $0x4] sm:$0xf]
    %v49 = vld [vmem:[#allocation5 + $0x8] sm:$0xf]
    %v50 = vld [vmem:[#allocation5 + $0xc] sm:$0xf]
    %v51 = vld [vmem:[%s2] sm:$0x1]
    %v53 = vlaneseq
    %v54 = vshrl.u32 %v53, 7
    %v55 = vsub.s32 0, %v54
    %v56 = vrot.slane %v51, %v55
    %v62 = vunpack.c.l.b16 %v47
    %v63 = vunpack.c.l.b16 %v48
    %v64 = vunpack.c.l.b16 %v49
    %v65 = vunpack.c.l.b16 %v50
    %v66 = vpack.c.b16 %v63, %v62
    %v67 = vpack.c.b16 %v65, %v64
    %vm70 = vcmask 261120
    %v72 = vsel %vm70, %v46, 0
    %74 = vmatprep.subr.bf16.mxu0 0
    %75 = vmatpush1.bf16.msra.mxu0 %v66
    %76 = vmatprep.subr.bf16.mxu0 0
    %77 = vmatpush1.bf16.msra.mxu0 %v67
    %78 = vmatprep.subr.bf16.mxu0 0
    %79 = vmatpush1.bf16.msra.mxu0 0
    %80 = vmatprep.subr.bf16.mxu0 0
    %81 = vmatpush1.bf16.msra.mxu0 0
    %82 = vmatprep.subr.bf16.mxu0 0
    %83 = vmatpush1.bf16.msra.mxu0 0
    %84 = vmatprep.subr.bf16.mxu0 0
    %85 = vmatpush1.bf16.msra.mxu0 0
    %86 = vmatprep.subr.bf16.mxu0 0
    %87 = vmatpush1.bf16.msra.mxu0 0
    %88 = vmatprep.subr.bf16.mxu0 0
    %89 = vmatpush1.bf16.msra.mxu0 0
    %90 = vmatprep.subr.bf16.mxu0 0
    %91 = vmatpush1.bf16.msra.mxu0 0
    %92 = vmatprep.subr.bf16.mxu0 0
    %93 = vmatpush1.bf16.msra.mxu0 0
    %94 = vmatprep.subr.bf16.mxu0 0
    %95 = vmatpush1.bf16.msra.mxu0 0
    %96 = vmatprep.subr.bf16.mxu0 0
    %97 = vmatpush1.bf16.msra.mxu0 0
    %98 = vmatprep.subr.bf16.mxu0 0
    %99 = vmatpush1.bf16.msra.mxu0 0
    %100 = vmatprep.subr.bf16.mxu0 0
    %101 = vmatpush1.bf16.msra.mxu0 0
    %102 = vmatprep.subr.bf16.mxu0 0
    %103 = vmatpush1.bf16.msra.mxu0 0
    %104 = vmatprep.subr.bf16.mxu0 0
    %105 = vmatpush1.bf16.msra.mxu0 0
    %106 = vmatprep.mubr.bf16.mxu0 0
    %107 = vmatmul.mubr.bf16.gmra.mrb[0].mxu0 %v72
    %v108 = vpop.f32.mrb[0].mxu0
    %v109 = vadd.f32 %v56, %v108
    %v110 = vpop.f32.mrb[0].mxu0
    %v111 = vpop.f32.mrb[0].mxu0
    %v112 = vadd.f32 %v56, %v111
    %v113 = vpop.f32.mrb[0].mxu0
    %114 = vdwg.mxu0
    %v115 = vpack.c.bf16 %v112, %v109
    %v117 = vunpack.c.l.b16 %v115
    %v118 = vunpack.c.h.b16 %v115
    %v119 = vpack.c.b16 %v117, %v117
    %v120 = vpack.c.b16 %v118, %v118
    %vm123 = vcmask 781312
    %124 = vst.msk [vmem:[#allocation7] sm:$0xf] %vm123, %v119
    %125 = vst.msk [vmem:[#allocation7 + $0x4] sm:$0xf] %vm123, %v120
    // Predicated region
    $region22: #{tpu_custom_call.1} parent=1 // pred_check
      _
    $region23: #{tpu_custom_call.1} parent=1 // pred_check_branch
      %127 = sbr.rel (0) target = $region25
    $region24: #{tpu_custom_call.1} parent=1 // pred_region
      %s129 = ssub.s32 128, 128
      %130 = vsyncadd [#allocation4], %s129
      %s131 = sshll.u32 [#allocation7], 4
      %s132 = int_to_ptr.vmem [resolvable:$true] %s131
      %137 = dma.vmem_to_hbm [thread:$0]  %s132, 128, %s3, [#allocation4], 64, 64, 4
    $region25: #{tpu_custom_call.1} parent=1 // pred_fallthru
      _
    // Predicated region
    $region26: #{tpu_custom_call.1} parent=1 // pred_check
      _
    $region27: #{tpu_custom_call.1} parent=1 // pred_check_branch
      %139 = sbr.rel (0) target = $region29
    $region28: #{tpu_custom_call.1} parent=1 // pred_region
      %140 = dma.done [#allocation4], 128
    $region29: #{tpu_custom_call.1} parent=1 // pred_fallthru
      _
    %141 = vsyncpa [#allocation3], 1
    %142 = vsyncpa [#allocation6], 1
    %143 = vsyncpa [#allocation4], 1

</llo_original>
